<compile_context>
chip_gen: v5e
topology: v5e:2x2
jax: 0.10.0
libtpu: 0.0.40
codegen_flags: <defaults>
</compile_context>

<pallas_src>
import functools
import math

import jax
import jax.numpy as jnp
from jax.experimental import pallas as pl
from jax.experimental.pallas import tpu as pltpu

_LANES = 128
_SUBLANES = 8


def _device_params():
    """Per-generation (num_explicit_cores, target_tile_rows)."""
    try:
        kind = jax.devices()[0].device_kind.lower()
    except Exception:
        kind = ""
    if "v7" in kind or "tpu7" in kind:
        # v7x: 2 TensorCores/chip, 64 MiB VMEM, ~3.2 TB/s HBM -> explicit
        # 2-way CORE_PARALLEL split, 1 MiB input blocks.
        return 2, 2048
    if "v5 lite" in kind or "v5e" in kind or "v5litepod" in kind:
        # v5e: single TC, 16 MiB default scoped VMEM -> 512 KiB blocks.
        return 1, 1024
    # v6e / v5p / v4 / unknown: single tile axis, 1 MiB blocks.
    # TODO(synk): v4/v5p megacore could also take the explicit 2-core split.
    return 1, 2048


def _sigmoid1(v):
    # Single-EUP sigmoid (one vtanh push) instead of exp + reciprocal.
    return 0.5 * jnp.tanh(0.5 * v) + 0.5


def _bce_iou_tile_kernel(x_ref, t_ref, out_ref, *, core_axis, tile_axis,
                         tiles_per_core, tile_rows, strip_rows,
                         full_valid_rows, valid_rows_ceil, rem_lanes,
                         need_mask):
    t_idx = pl.program_id(tile_axis)

    @pl.when(t_idx == 0)
    def _init():
        out_ref[...] = jnp.zeros_like(out_ref)

    if core_axis is None:
        tile_global = t_idx
    else:
        tile_global = pl.program_id(core_axis) * tiles_per_core + t_idx
    # Row-level index math only (no element-count multiply): stays inside
    # int32 for any realistic n (rows = n/128).
    rows_before = tile_global * tile_rows

    n_strips = tile_rows // strip_rows

    def strip_terms(x, t, mask_f):
        s1 = _sigmoid1(x)            # sigmoid(x), reused for the BCE log term
        p = _sigmoid1(s1)            # double sigmoid (matches PyTorch module)
        # Stable BCEWithLogits:  max(x,0) - x*t - log(sigmoid(|x|))
        bce = (jnp.maximum(x, 0.0) - x * t
               - jnp.log(jnp.where(x >= 0, s1, 1.0 - s1)))
        if mask_f is not None:
            bce = bce * mask_f
            p = p * mask_f

        def fold(v):  # (strip_rows,128) -> (8,128): sublane-group VALU adds
            return v.reshape(strip_rows // _SUBLANES, _SUBLANES, _LANES).sum(axis=0)

        return fold(bce), fold(p * t), fold(p + t)

    def run(masked):
        def body(i, carry):
            acc_b, acc_i, acc_t = carry
            r0 = pl.multiple_of(i * strip_rows, strip_rows)
            x = x_ref[pl.ds(r0, strip_rows), :].astype(jnp.float32)
            t = t_ref[pl.ds(r0, strip_rows), :].astype(jnp.float32)
            if masked:
                grow = (rows_before + r0
                        + jax.lax.broadcasted_iota(jnp.int32, (strip_rows, _LANES), 0))
                lane = jax.lax.broadcasted_iota(jnp.int32, (strip_rows, _LANES), 1)
                m = (grow < full_valid_rows) | (
                    (grow == full_valid_rows) & (lane < rem_lanes))
                x = jnp.where(m, x, 0.0)   # also scrubs OOB garbage of a partial block
                t = jnp.where(m, t, 0.0)
                d_b, d_i, d_t = strip_terms(x, t, m.astype(jnp.float32))
            else:
                d_b, d_i, d_t = strip_terms(x, t, None)
            return acc_b + d_b, acc_i + d_i, acc_t + d_t

        zero = jnp.zeros((_SUBLANES, _LANES), jnp.float32)
        acc_b, acc_i, acc_t = jax.lax.fori_loop(
            0, n_strips, body, (zero, zero, zero), unroll=True)
        out_ref[0] += acc_b      # sum of per-element BCE
        out_ref[1] += acc_i      # intersection = sum(p * t)
        out_ref[2] += acc_t      # total        = sum(p + t)

    if not need_mask:
        # Grid covers exactly n elements: every tile is fully valid.
        run(masked=False)
        return

    is_full = rows_before + tile_rows <= full_valid_rows
    has_valid = rows_before < valid_rows_ceil

    @pl.when(is_full)
    def _fast():
        run(masked=False)

    @pl.when(jnp.logical_and(jnp.logical_not(is_full), has_valid))
    def _masked():
        run(masked=True)
    # Tiles with no valid rows (clamped duplicates from the core split) skip
    # all compute entirely.


def bce_plus_iou_loss(inputs, targets, bce_weight=0.5, iou_weight=0.5, smooth=1.0):
    assert inputs.shape == targets.shape
    n = math.prod(inputs.shape)
    assert n > 0

    num_cores, target_tile_rows = _device_params()

    x_flat = inputs.reshape(-1)
    t_flat = targets.reshape(-1)

    # dtype-aware minimal padding; inputs stay in their native dtype on HBM
    # (the in-kernel astype handles the upcast).
    min_itemsize = min(jnp.dtype(inputs.dtype).itemsize,
                       jnp.dtype(targets.dtype).itemsize)
    sub_tile = max(_SUBLANES, _SUBLANES * 4 // max(1, min_itemsize))
    chunk = sub_tile * _LANES
    rem = n % chunk
    if rem:
        pad = chunk - rem
        x_flat = jnp.pad(x_flat, (0, pad))
        t_flat = jnp.pad(t_flat, (0, pad))
    rows = x_flat.shape[0] // _LANES
    x2 = x_flat.reshape(rows, _LANES)
    t2 = t_flat.reshape(rows, _LANES)

    tile_rows = min(target_tile_rows, rows)   # rows is a multiple of sub_tile
    tiles_total = pl.cdiv(rows, tile_rows)
    num_cores = min(num_cores, tiles_total)
    tiles_per_core = pl.cdiv(tiles_total, num_cores)

    # Largest strip in {256, 128, tile_rows} that divides tile_rows.
    if tile_rows % 256 == 0:
        strip_rows = 256
    elif tile_rows % 128 == 0:
        strip_rows = 128
    else:
        strip_rows = tile_rows

    covered = num_cores * tiles_per_core * tile_rows * _LANES
    assert covered >= n  # masked path is emitted whenever grid over-covers
    need_mask = covered != n

    full_valid_rows = n // _LANES        # rows with all 128 lanes valid
    rem_lanes = n % _LANES               # valid lanes in the partial row
    valid_rows_ceil = pl.cdiv(n, _LANES)

    if num_cores > 1:
        grid = (num_cores, tiles_per_core)
        dim_sem = (pltpu.CORE_PARALLEL, pltpu.ARBITRARY)

        def in_map(c, t):
            # Clamp so duplicate tail tiles never index past the array; their
            # contribution is skipped in-kernel.
            return (jnp.minimum(c * tiles_per_core + t, tiles_total - 1), 0)

        out_map = lambda c, t: (c, 0, 0)
        core_axis, tile_axis = 0, 1
    else:
        grid = (tiles_total,)
        dim_sem = (pltpu.ARBITRARY,)
        in_map = lambda t: (t, 0)
        out_map = lambda t: (0, 0, 0)
        core_axis, tile_axis = None, 0

    kernel = functools.partial(
        _bce_iou_tile_kernel,
        core_axis=core_axis, tile_axis=tile_axis,
        tiles_per_core=tiles_per_core, tile_rows=tile_rows,
        strip_rows=strip_rows,
        full_valid_rows=full_valid_rows, valid_rows_ceil=valid_rows_ceil,
        rem_lanes=rem_lanes, need_mask=need_mask)

    bytes_accessed = n * (jnp.dtype(inputs.dtype).itemsize
                          + jnp.dtype(targets.dtype).itemsize)
    cost = pl.CostEstimate(flops=12 * n, transcendentals=3 * n,
                           bytes_accessed=int(bytes_accessed))

    partials = pl.pallas_call(
        kernel,
        out_shape=jax.ShapeDtypeStruct((num_cores * 3, _SUBLANES, _LANES),
                                       jnp.float32),
        grid=grid,
        in_specs=[pl.BlockSpec((tile_rows, _LANES), in_map),
                  pl.BlockSpec((tile_rows, _LANES), in_map)],
        out_specs=pl.BlockSpec((3, _SUBLANES, _LANES), out_map),
        compiler_params=pltpu.CompilerParams(dimension_semantics=dim_sem),
        cost_estimate=cost,
    )(x2, t2)

    # Tiny cross-lane / cross-core reduction + scalar epilogue in plain JAX.
    sums = partials.reshape(num_cores, 3, _SUBLANES, _LANES).sum(axis=(0, 2, 3))
    bce_mean = sums[0] / jnp.float32(n)
    intersection = sums[1]
    total = sums[2]
    union = total - intersection
    iou = (intersection + smooth) / (union + smooth)
    return bce_weight * bce_mean + iou_weight * (1.0 - iou)


def _reference_loss(inputs, targets, bce_weight=0.5, iou_weight=0.5, smooth=1.0):
    x = inputs.astype(jnp.float32).reshape(-1)
    t = targets.astype(jnp.float32).reshape(-1)
    bce = jnp.mean(jnp.maximum(x, 0.0) - x * t + jnp.log1p(jnp.exp(-jnp.abs(x))))
    p = jax.nn.sigmoid(jax.nn.sigmoid(x))  # double sigmoid, as in the PyTorch module
    inter = jnp.sum(p * t)
    total = jnp.sum(p + t)
    union = total - inter
    iou = (inter + smooth) / (union + smooth)
    return bce_weight * bce + iou_weight * (1.0 - iou)


if __name__ == "__main__":
    key = jax.random.PRNGKey(0)
    k1, k2 = jax.random.split(key)
    # NCHW logits + binary targets, small shapes
    inputs = jax.random.normal(k1, (2, 4, 16, 16), dtype=jnp.float32)
    targets = jax.random.bernoulli(k2, 0.5, (2, 4, 16, 16)).astype(jnp.float32)

    loss = jax.block_until_ready(bce_plus_iou_loss(inputs, targets))
    ref = jax.block_until_ready(_reference_loss(inputs, targets))
    assert jnp.allclose(loss, ref, atol=5e-5, rtol=1e-4), (loss, ref)

    print("KERNEL_OK")
</pallas_src>

<mosaic_0001>
module attributes {stable_mosaic.version = 11 : i64} {
  func.func @_bce_iou_tile_kernel(%arg0: i32, %arg1: memref<16x128xf32, #tpu.memory_space<vmem>>, %arg2: memref<16x128xf32, #tpu.memory_space<vmem>>, %arg3: memref<3x8x128xf32, #tpu.memory_space<vmem>>) attributes {dimension_semantics = [#tpu.dimension_semantics<arbitrary>], iteration_bounds = array<i64: 1>, scalar_prefetch = 0 : i64, scratch_operands = 0 : i64, tpu.core_type = #tpu.core_type<tc>, window_params = [{transform_indices = @transform_0, window_bounds = array<i64: 16, 128>}, {transform_indices = @transform_1, window_bounds = array<i64: 16, 128>}, {pipeline_mode = #tpu.pipeline_mode<synchronous>, transform_indices = @transform_2, window_bounds = array<i64: 3, 8, 128>}]} {
    %c0_i32 = arith.constant 0 : i32
    %0 = arith.cmpi eq, %arg0, %c0_i32 : i32
    %1 = arith.extui %0 : i1 to i32
    %c0_i32_0 = arith.constant 0 : i32
    %2 = arith.cmpi ne, %1, %c0_i32_0 : i32
    scf.if %2 {
      %cst_31 = arith.constant 0.000000e+00 : f32
      %64 = vector.broadcast %cst_31 : f32 to vector<3x8x128xf32>
      %c0_32 = arith.constant 0 : index
      %c0_33 = arith.constant 0 : index
      %c0_34 = arith.constant 0 : index
      %65 = vector.load %arg3[%c0_32, %c0_33, %c0_34] : memref<3x8x128xf32, #tpu.memory_space<vmem>>, vector<3x8x128xf32>
      tpu.vector_store %arg3[%c0_32, %c0_33, %c0_34], %64 {strides = array<i32>} : memref<3x8x128xf32, #tpu.memory_space<vmem>>, vector<3x8x128xf32>,
    } else {
    }
    %cst = arith.constant 0.000000e+00 : f32
    %3 = vector.broadcast %cst : f32 to vector<8x128xf32>
    %c0_i32_1 = arith.constant 0 : i32
    %c16_i32 = arith.constant 16 : i32
    %4 = arith.muli %c0_i32_1, %c16_i32 : i32
    %5 = tpu.assume_multiple %4, 16 : i32
    %6 = arith.index_cast %5 : i32 to index
    %c0 = arith.constant 0 : index
    %7 = vector.load %arg1[%6, %c0] : memref<16x128xf32, #tpu.memory_space<vmem>>, vector<16x128xf32>
    %8 = arith.index_cast %5 : i32 to index
    %c0_2 = arith.constant 0 : index
    %9 = vector.load %arg2[%8, %c0_2] : memref<16x128xf32, #tpu.memory_space<vmem>>, vector<16x128xf32>
    %cst_3 = arith.constant 5.000000e-01 : f32
    %10 = vector.broadcast %cst_3 : f32 to vector<16x128xf32>
    %11 = arith.mulf %10, %7 : vector<16x128xf32>
    %12 = math.tanh %11 : vector<16x128xf32>
    %cst_4 = arith.constant 5.000000e-01 : f32
    %13 = vector.broadcast %cst_4 : f32 to vector<16x128xf32>
    %14 = arith.mulf %13, %12 : vector<16x128xf32>
    %cst_5 = arith.constant 5.000000e-01 : f32
    %15 = vector.broadcast %cst_5 : f32 to vector<16x128xf32>
    %16 = arith.addf %14, %15 : vector<16x128xf32>
    %cst_6 = arith.constant 5.000000e-01 : f32
    %17 = vector.broadcast %cst_6 : f32 to vector<16x128xf32>
    %18 = arith.mulf %17, %16 : vector<16x128xf32>
    %19 = math.tanh %18 : vector<16x128xf32>
    %cst_7 = arith.constant 5.000000e-01 : f32
    %20 = vector.broadcast %cst_7 : f32 to vector<16x128xf32>
    %21 = arith.mulf %20, %19 : vector<16x128xf32>
    %cst_8 = arith.constant 5.000000e-01 : f32
    %22 = vector.broadcast %cst_8 : f32 to vector<16x128xf32>
    %23 = arith.addf %21, %22 : vector<16x128xf32>
    %cst_9 = arith.constant 0.000000e+00 : f32
    %24 = vector.broadcast %cst_9 : f32 to vector<16x128xf32>
    %25 = arith.maximumf %7, %24 : vector<16x128xf32>
    %26 = arith.mulf %7, %9 : vector<16x128xf32>
    %27 = arith.subf %25, %26 : vector<16x128xf32>
    %cst_10 = arith.constant 0.000000e+00 : f32
    %28 = vector.broadcast %cst_10 : f32 to vector<16x128xf32>
    %29 = arith.cmpf oge, %7, %28 : vector<16x128xf32>
    %cst_11 = arith.constant 1.000000e+00 : f32
    %30 = vector.broadcast %cst_11 : f32 to vector<16x128xf32>
    %31 = arith.subf %30, %16 : vector<16x128xf32>
    %32 = arith.select %29, %16, %31 : vector<16x128xi1>, vector<16x128xf32>
    %33 = math.log %32 : vector<16x128xf32>
    %34 = arith.subf %27, %33 : vector<16x128xf32>
    %35 = vector.shape_cast %34 : vector<16x128xf32> to vector<2x8x128xf32>
    %cst_12 = arith.constant dense<0.000000e+00> : vector<8x128xf32>
    %36 = vector.multi_reduction <add>, %35, %cst_12 [0] : vector<2x8x128xf32> to vector<8x128xf32>
    %37 = arith.mulf %23, %9 : vector<16x128xf32>
    %38 = vector.shape_cast %37 : vector<16x128xf32> to vector<2x8x128xf32>
    %cst_13 = arith.constant dense<0.000000e+00> : vector<8x128xf32>
    %39 = vector.multi_reduction <add>, %38, %cst_13 [0] : vector<2x8x128xf32> to vector<8x128xf32>
    %40 = arith.addf %23, %9 : vector<16x128xf32>
    %41 = vector.shape_cast %40 : vector<16x128xf32> to vector<2x8x128xf32>
    %cst_14 = arith.constant dense<0.000000e+00> : vector<8x128xf32>
    %42 = vector.multi_reduction <add>, %41, %cst_14 [0] : vector<2x8x128xf32> to vector<8x128xf32>
    %43 = arith.addf %3, %36 : vector<8x128xf32>
    %44 = arith.addf %3, %39 : vector<8x128xf32>
    %45 = arith.addf %3, %42 : vector<8x128xf32>
    %c1_i32 = arith.constant 1 : i32
    %c0_15 = arith.constant 0 : index
    %c0_16 = arith.constant 0 : index
    %c0_17 = arith.constant 0 : index
    %46 = vector.load %arg3[%c0_15, %c0_16, %c0_17] : memref<3x8x128xf32, #tpu.memory_space<vmem>>, vector<1x8x128xf32>
    %47 = vector.shape_cast %46 : vector<1x8x128xf32> to vector<8x128xf32>
    %48 = arith.addf %47, %43 : vector<8x128xf32>
    %c0_18 = arith.constant 0 : index
    %c0_19 = arith.constant 0 : index
    %c0_20 = arith.constant 0 : index
    %49 = vector.load %arg3[%c0_18, %c0_19, %c0_20] : memref<3x8x128xf32, #tpu.memory_space<vmem>>, vector<1x8x128xf32>
    %50 = vector.shape_cast %49 : vector<1x8x128xf32> to vector<8x128xf32>
    %51 = vector.shape_cast %48 : vector<8x128xf32> to vector<1x8x128xf32>
    tpu.vector_store %arg3[%c0_18, %c0_19, %c0_20], %51 {strides = array<i32>} : memref<3x8x128xf32, #tpu.memory_space<vmem>>, vector<1x8x128xf32>,
    %c1 = arith.constant 1 : index
    %c0_21 = arith.constant 0 : index
    %c0_22 = arith.constant 0 : index
    %52 = vector.load %arg3[%c1, %c0_21, %c0_22] : memref<3x8x128xf32, #tpu.memory_space<vmem>>, vector<1x8x128xf32>
    %53 = vector.shape_cast %52 : vector<1x8x128xf32> to vector<8x128xf32>
    %54 = arith.addf %53, %44 : vector<8x128xf32>
    %c1_23 = arith.constant 1 : index
    %c0_24 = arith.constant 0 : index
    %c0_25 = arith.constant 0 : index
    %55 = vector.load %arg3[%c1_23, %c0_24, %c0_25] : memref<3x8x128xf32, #tpu.memory_space<vmem>>, vector<1x8x128xf32>
    %56 = vector.shape_cast %55 : vector<1x8x128xf32> to vector<8x128xf32>
    %57 = vector.shape_cast %54 : vector<8x128xf32> to vector<1x8x128xf32>
    tpu.vector_store %arg3[%c1_23, %c0_24, %c0_25], %57 {strides = array<i32>} : memref<3x8x128xf32, #tpu.memory_space<vmem>>, vector<1x8x128xf32>,
    %c2 = arith.constant 2 : index
    %c0_26 = arith.constant 0 : index
    %c0_27 = arith.constant 0 : index
    %58 = vector.load %arg3[%c2, %c0_26, %c0_27] : memref<3x8x128xf32, #tpu.memory_space<vmem>>, vector<1x8x128xf32>
    %59 = vector.shape_cast %58 : vector<1x8x128xf32> to vector<8x128xf32>
    %60 = arith.addf %59, %45 : vector<8x128xf32>
    %c2_28 = arith.constant 2 : index
    %c0_29 = arith.constant 0 : index
    %c0_30 = arith.constant 0 : index
    %61 = vector.load %arg3[%c2_28, %c0_29, %c0_30] : memref<3x8x128xf32, #tpu.memory_space<vmem>>, vector<1x8x128xf32>
    %62 = vector.shape_cast %61 : vector<1x8x128xf32> to vector<8x128xf32>
    %63 = vector.shape_cast %60 : vector<8x128xf32> to vector<1x8x128xf32>
    tpu.vector_store %arg3[%c2_28, %c0_29, %c0_30], %63 {strides = array<i32>} : memref<3x8x128xf32, #tpu.memory_space<vmem>>, vector<1x8x128xf32>,
    return
  }
  func.func @transform_0(%arg0: i32) -> (i32, i32) {
    %c0_i32 = arith.constant 0 : i32
    %c0_i32_0 = arith.constant 0 : i32
    return %arg0, %c0_i32 : i32, i32
  }
  func.func @transform_1(%arg0: i32) -> (i32, i32) {
    %c0_i32 = arith.constant 0 : i32
    %c0_i32_0 = arith.constant 0 : i32
    return %arg0, %c0_i32 : i32, i32
  }
  func.func @transform_2(%arg0: i32) -> (i32, i32, i32) {
    %c0_i32 = arith.constant 0 : i32
    %c0_i32_0 = arith.constant 0 : i32
    %c0_i32_1 = arith.constant 0 : i32
    %c0_i32_2 = arith.constant 0 : i32
    return %c0_i32, %c0_i32_0, %c0_i32_1 : i32, i32, i32
  }
}

</mosaic_0001>

<llo_original>
// kernel: tpu_custom_call.1
$region0: #{tpu_custom_call.1}
  #allocation0 [shape = 'u32[]', space=smem, size = 0x4, offset = 0x4, fixed_abs, tag = 'smem constant byte address 0x4 - core index']
  #allocation1 [shape = 'u32[72,128]{1,0:T(1,128)}', space=vmem, size = 0x9000, scoped, tag = 'internal scratch']
  %s0 = inlined_call_operand.hbm [shape: f32[16,128], index: 0, kind: input, shape index: {}]
  %s1 = inlined_call_operand.hbm [shape: f32[16,128], index: 1, kind: input, shape index: {}]
  %s2 = inlined_call_operand.hbm [shape: f32[3,8,128], index: 2, kind: output, shape index: {}]
  %s3 = sld [smem:[#allocation0]]
  $region30: #{tpu_custom_call.1} parent=0
    _
  %s5 = ssub.s32 1, %s3
  %s6 = scalar_select 0, %s5, %s3
  $region1: #{tpu_custom_call.1} parent=0
    #allocation2 [shape = 'u8[8192]{0}', space=vmem, size = 0x2000, scoped, tag = 'input window, operand 0, single buffered']
    #allocation3 [shape = 's32[1]{0}', space=sflag, size = 0x4, scoped, tag = 'scoped memory for tpu_custom_call.1']
    #allocation4 [shape = 's32[1]{0}', space=sflag, size = 0x4, scoped, tag = 'scoped memory for tpu_custom_call.1']
    #allocation5 [shape = 'u8[8192]{0}', space=vmem, size = 0x2000, scoped, tag = 'input window, operand 1, single buffered']
    #allocation6 [shape = 's32[1]{0}', space=sflag, size = 0x4, scoped, tag = 'scoped memory for tpu_custom_call.1']
    #allocation7 [shape = 'u8[12288]{0}', space=vmem, size = 0x3000, scoped, tag = 'output window, operand 0, single buffered']
    %7 = vsyncpa [#allocation3], 0
    %8 = vsyncpa [#allocation6], 0
    %9 = vsyncpa [#allocation4], 0
    // Predicated region
    $region2: #{tpu_custom_call.1} parent=1 // pred_check
      _
    $region3: #{tpu_custom_call.1} parent=1 // pred_check_branch
      %11 = sbr.rel (0) target = $region5
    $region4: #{tpu_custom_call.1} parent=1 // pred_region
      %13 = vsyncadd [#allocation3], 0
      %s14 = sshll.u32 %s0, 4
      %s15 = int_to_ptr.hbm [resolvable:$true] %s14
      %s16 = sshll.u32 [#allocation2], 4
      %s17 = int_to_ptr.vmem [resolvable:$true] %s16
      %22 = dma.hbm_to_vmem [thread:$0]  %s15, 256, %s17, [#allocation3], 128, 128, 8
    $region5: #{tpu_custom_call.1} parent=1 // pred_fallthru
      _
    // Predicated region
    $region6: #{tpu_custom_call.1} parent=1 // pred_check
      _
    $region7: #{tpu_custom_call.1} parent=1 // pred_check_branch
      %24 = sbr.rel (0) target = $region9
    $region8: #{tpu_custom_call.1} parent=1 // pred_region
      %26 = vsyncadd [#allocation6], 0
      %s27 = sshll.u32 %s1, 4
      %s28 = int_to_ptr.hbm [resolvable:$true] %s27
      %s29 = sshll.u32 [#allocation5], 4
      %s30 = int_to_ptr.vmem [resolvable:$true] %s29
      %35 = dma.hbm_to_vmem [thread:$0]  %s28, 256, %s30, [#allocation6], 128, 128, 8
    $region9: #{tpu_custom_call.1} parent=1 // pred_fallthru
      _
    // Predicated region
    $region10: #{tpu_custom_call.1} parent=1 // pred_check
      _
    $region11: #{tpu_custom_call.1} parent=1 // pred_check_branch
      %37 = sbr.rel (0) target = $region13
    $region12: #{tpu_custom_call.1} parent=1 // pred_region
      %39 = dma.done [#allocation3], 256
    $region13: #{tpu_custom_call.1} parent=1 // pred_fallthru
      _
    // Predicated region
    $region14: #{tpu_custom_call.1} parent=1 // pred_check
      _
    $region15: #{tpu_custom_call.1} parent=1 // pred_check_branch
      %41 = sbr.rel (0) target = $region17
    $region16: #{tpu_custom_call.1} parent=1 // pred_region
      %43 = dma.done [#allocation6], 256
    $region17: #{tpu_custom_call.1} parent=1 // pred_fallthru
      _
    %p44 = scmp.eq.s32.totalorder 0, 0
    // Predicated region
    $region18: #{tpu_custom_call.1} parent=1 // pred_check
      %p45 = pneg %p44
    $region19: #{tpu_custom_call.1} parent=1 // pred_check_branch
      %47 = sbr.rel (%p45) target = $region21
    $region20: #{tpu_custom_call.1} parent=1 // pred_region
      %48 = vst [vmem:[#allocation7] sm:$0xff] 0.0
      %49 = vst [vmem:[#allocation7 + $0x8] sm:$0xff] 0.0
      %50 = vst [vmem:[#allocation7 + $0x10] sm:$0xff] 0.0
    $region21: #{tpu_custom_call.1} parent=1 // pred_fallthru
      _
    %v51 = vld [vmem:[#allocation2] sm:$0xff]
    %v52 = vld [vmem:[#allocation2 + $0x8] sm:$0xff]
    %v53 = vld [vmem:[#allocation5] sm:$0xff]
    %v54 = vld [vmem:[#allocation5 + $0x8] sm:$0xff]
    %v55 = vmul.f32 %v51, 0.5
    %v56 = vmul.f32 %v52, 0.5
    %v57 = vtanh.pop %v55
    %v58 = vtanh.pop %v56
    %v59 = vmul.f32 %v57, 0.5
    %v60 = vmul.f32 %v58, 0.5
    %v61 = vadd.f32 %v59, 0.5
    %v62 = vadd.f32 %v60, 0.5
    %v63 = vmul.f32 %v61, 0.5
    %v64 = vmul.f32 %v62, 0.5
    %v65 = vtanh.pop %v63
    %v66 = vtanh.pop %v64
    %v67 = vmul.f32 %v65, 0.5
    %v68 = vmul.f32 %v66, 0.5
    %v69 = vadd.f32 %v67, 0.5
    %v70 = vadd.f32 %v68, 0.5
    %v71 = vmax.f32 %v51, 0.0
    %v72 = vmax.f32 %v52, 0.0
    %v73 = vmul.f32 %v51, %v53
    %v74 = vmul.f32 %v52, %v54
    %v75 = vsub.f32 %v71, %v73
    %v76 = vsub.f32 %v72, %v74
    %vm77 = vcmp.ge.f32.partialorder %v51, 0.0
    %vm78 = vcmp.ge.f32.partialorder %v52, 0.0
    %v79 = vsub.f32 1.0, %v61
    %v80 = vsub.f32 1.0, %v62
    %v81 = vsel %vm77, %v61, %v79
    %v82 = vsel %vm78, %v62, %v80
    %v83 = vlog2.pop %v81
    %v84 = vmul.f32 %v83, 0.6931472
    %v85 = vlog2.pop %v82
    %v86 = vmul.f32 %v85, 0.6931472
    %v87 = vsub.f32 %v75, %v84
    %v88 = vsub.f32 %v76, %v86
    %v89 = vadd.f32 %v87, %v88
    %v90 = vmul.f32 %v69, %v53
    %v91 = vmul.f32 %v70, %v54
    %v92 = vadd.f32 %v90, %v91
    %v93 = vadd.f32 %v69, %v53
    %v94 = vadd.f32 %v70, %v54
    %v95 = vadd.f32 %v93, %v94
    %v96 = vadd.f32 %v89, 0.0
    %v97 = vadd.f32 %v92, 0.0
    %v98 = vadd.f32 %v95, 0.0
    %v99 = vld [vmem:[#allocation7] sm:$0xff]
    %v100 = vadd.f32 %v99, %v96
    %101 = vst [vmem:[#allocation7] sm:$0xff] %v100
    %s102 = scalar_lea.vmem [#allocation7], 8
    %v103 = vld [vmem:[%s102] sm:$0xff]
    %v104 = vadd.f32 %v103, %v97
    %105 = vst [vmem:[%s102] sm:$0xff] %v104
    %s106 = scalar_lea.vmem [#allocation7], 16
    %v107 = vld [vmem:[%s106] sm:$0xff]
    %v108 = vadd.f32 %v107, %v98
    %109 = vst [vmem:[%s106] sm:$0xff] %v108
    // Predicated region
    $region22: #{tpu_custom_call.1} parent=1 // pred_check
      _
    $region23: #{tpu_custom_call.1} parent=1 // pred_check_branch
      %111 = sbr.rel (0) target = $region25
    $region24: #{tpu_custom_call.1} parent=1 // pred_region
      %113 = vsyncadd [#allocation4], 0
      %s114 = sshll.u32 [#allocation7], 4
      %s115 = int_to_ptr.vmem [resolvable:$true] %s114
      %s116 = sshll.u32 %s2, 4
      %s117 = int_to_ptr.hbm [resolvable:$true] %s116
      %122 = dma.vmem_to_hbm [thread:$0]  %s115, 384, %s117, [#allocation4], 128, 128, 8
    $region25: #{tpu_custom_call.1} parent=1 // pred_fallthru
      _
    // Predicated region
    $region26: #{tpu_custom_call.1} parent=1 // pred_check
      _
    $region27: #{tpu_custom_call.1} parent=1 // pred_check_branch
      %124 = sbr.rel (0) target = $region29
    $region28: #{tpu_custom_call.1} parent=1 // pred_region
      %126 = dma.done [#allocation4], 384
    $region29: #{tpu_custom_call.1} parent=1 // pred_fallthru
      _
    %127 = vsyncpa [#allocation3], 1
    %128 = vsyncpa [#allocation6], 1
    %129 = vsyncpa [#allocation4], 1

</llo_original>
